<compile_context>
chip_gen: v7x
topology: tpu7x:2x2x1
jax: 0.10.0
libtpu: 0.0.40
codegen_flags: <defaults>
</compile_context>

<pallas_src>
import functools

import jax
import jax.numpy as jnp
from jax import lax
from jax.experimental import pallas as pl
from jax.experimental.pallas import tpu as pltpu

TEMPERATURE = 0.07
EPS = 1e-8
NORM_EPS = 1e-12  # F.normalize default eps


def _round_up(x, m):
    return (x + m - 1) // m * m


def _pick_tiles(batch):
    """Returns (TM anchor/lane tile, TN contrast/reduction tile, padded Bp)."""
    bp = _round_up(max(batch, 128), 128)
    if bp <= 1024:
        # Contrast block spans the whole padded batch: its block index is
        # constant over the grid, so Pallas fetches it once and keeps it
        # resident (minimizes HBM re-reads for small B).
        return 128, bp, bp
    # Large batch: tile the contrast (reduction) axis so VMEM stays bounded.
    bp = _round_up(batch, 512)
    return 256, 512, bp


def _supcon_kernel(fr_ref, fc_ref, lab_r_ref, lab_c_ref, out_ref,
                   z_acc, s_acc, p_acc, *,
                   batch_size, tile_m, tile_n, temperature, eps):
    i = pl.program_id(0)          # anchor tile index   (parallel)
    j = pl.program_id(1)          # contrast tile index (reduction, last)

    @pl.when(j == 0)
    def _init():
        z_acc[...] = jnp.zeros_like(z_acc)
        s_acc[...] = jnp.zeros_like(s_acc)
        p_acc[...] = jnp.zeros_like(p_acc)

    # (TN, TM) similarity tile on the MXU: contrast rows x anchor columns.
    # Inputs arrive pre-normalized (and typically bf16); accumulate in f32.
    sim = lax.dot_general(
        fc_ref[...], fr_ref[...],
        dimension_numbers=(((1,), (1,)), ((), ())),
        preferred_element_type=jnp.float32,
    ) * (1.0 / temperature)

    # Positive-pair mask (diagonal included, exactly like the PyTorch module).
    lab_c = lab_c_ref[...]        # (TN, 1) contrast labels
    lab_r = lab_r_ref[...]        # (1, TM) anchor labels
    pos = ((lab_c == lab_r) & (lab_c != -1) & (lab_r != -1)).astype(jnp.float32)

    # Denominator mask: drop the diagonal and any padded contrast rows.
    shape = sim.shape
    con_g = j * tile_n + lax.broadcasted_iota(jnp.int32, shape, 0)
    anc_g = i * tile_m + lax.broadcasted_iota(jnp.int32, shape, 1)
    keep = (con_g != anc_g) & (con_g < batch_size)
    exp_sim = jnp.where(keep, jnp.exp(sim), 0.0)

    # Lane-oriented per-anchor accumulators: reduce over the contrast axis (0).
    z_acc[...] += jnp.sum(exp_sim, axis=0, keepdims=True)
    s_acc[...] += jnp.sum(pos * sim, axis=0, keepdims=True)
    p_acc[...] += jnp.sum(pos, axis=0, keepdims=True)

    @pl.when(j == pl.num_programs(1) - 1)
    def _finalize():
        z = z_acc[...]
        s = s_acc[...]
        p = p_acc[...]
        # == sum(pos * (sim - log(Z + eps))) / (sum(pos) + eps), but without
        # materializing any (TN, TM) log_prob temporaries.
        out_ref[...] = (s - jnp.log(z + eps) * p) / (p + eps)   # (1, TM)


def supcon_loss(features, labels, *, temperature=TEMPERATURE, eps=EPS,
                compute_dtype=jnp.bfloat16):
    """features: (B, D) float, labels: (B,) int -> scalar float32 loss."""
    B, D = features.shape
    f = features.astype(jnp.float32)

    # One-time L2 normalization in XLA, exactly F.normalize: x / max(||x||, eps).
    norm = jnp.sqrt(jnp.sum(f * f, axis=1, keepdims=True))
    fn = f / jnp.maximum(norm, NORM_EPS)

    TM, TN, Bp = _pick_tiles(B)
    Dp = _round_up(max(D, 128), 128)

    # Zero feature pad is exact (doesn't change dot products); label pad = -1
    # so padded rows are never positives; padded contrast rows are masked out
    # of the denominator in-kernel via (col < B).
    f_pad = jnp.zeros((Bp, Dp), compute_dtype).at[:B, :D].set(
        fn.astype(compute_dtype))
    lab_pad = jnp.full((Bp,), -1, jnp.int32).at[:B].set(labels.astype(jnp.int32))
    lab_rows = lab_pad.reshape(1, Bp)     # anchors along lanes
    lab_cols = lab_pad.reshape(Bp, 1)     # contrast along sublanes

    kernel = functools.partial(
        _supcon_kernel, batch_size=B, tile_m=TM, tile_n=TN,
        temperature=float(temperature), eps=float(eps))

    # Scoped-VMEM budget from actual buffer sizes (+ headroom), capped at the
    # smallest physical VMEM (v7x: 64 MiB).
    itemsize = jnp.dtype(compute_dtype).itemsize
    est = (2 * (TM + TN) * Dp * itemsize        # double-buffered feature tiles
           + 2 * (8 * TM + TN * 128) * 4        # label tiles (layout-padded)
           + (2 + 3) * 8 * TM * 4               # output block + 3 accumulators
           + 10 * TN * TM * 4)                  # (TN, TM) f32 temporaries
    vmem_limit = int(min(max(2 * est, 32 * 1024 * 1024), 64 * 1024 * 1024))

    mlpp = pl.pallas_call(
        kernel,
        out_shape=jax.ShapeDtypeStruct((1, Bp), jnp.float32),
        grid_spec=pltpu.PrefetchScalarGridSpec(
            num_scalar_prefetch=0,
            grid=(Bp // TM, Bp // TN),
            in_specs=[
                pl.BlockSpec((TM, Dp), lambda i, j: (i, 0)),   # anchor rows
                pl.BlockSpec((TN, Dp), lambda i, j: (j, 0)),   # contrast rows
                pl.BlockSpec((1, TM), lambda i, j: (0, i)),    # anchor labels
                pl.BlockSpec((TN, 1), lambda i, j: (j, 0)),    # contrast labels
            ],
            out_specs=pl.BlockSpec((1, TM), lambda i, j: (0, i)),
            scratch_shapes=[pltpu.VMEM((1, TM), jnp.float32)] * 3,
        ),
        compiler_params=pltpu.CompilerParams(
            dimension_semantics=("parallel", "arbitrary"),
            vmem_limit_bytes=vmem_limit),
    )(f_pad, f_pad, lab_rows, lab_cols)

    # Tiny final reduction over the B real anchors (padded anchors emit 0).
    return -jnp.sum(mlpp[0, :B]) / B


def supcon_loss_ref(features, labels, temperature=TEMPERATURE, eps=EPS):
    """Pure-JAX reference mirroring the PyTorch SupConLoss.forward exactly."""
    f = features.astype(jnp.float32)
    norm = jnp.sqrt(jnp.sum(f * f, axis=1, keepdims=True))
    fn = f / jnp.maximum(norm, NORM_EPS)
    sim = (fn @ fn.T) / temperature
    lab = labels.reshape(-1, 1)
    valid = (lab != -1).astype(jnp.float32)
    mask = (lab == lab.T).astype(jnp.float32) * (valid @ valid.T)
    B = f.shape[0]
    logits_mask = jnp.ones((B, B), jnp.float32) - jnp.eye(B, dtype=jnp.float32)
    exp_sim = jnp.exp(sim) * logits_mask
    log_prob = sim - jnp.log(jnp.sum(exp_sim, axis=1, keepdims=True) + eps)
    mlpp = jnp.sum(mask * log_prob, axis=1) / (jnp.sum(mask, axis=1) + eps)
    return -jnp.mean(mlpp)


if __name__ == "__main__":
    key = jax.random.PRNGKey(0)
    kf, kl = jax.random.split(key)
    B, D = 8, 32
    features = jax.random.normal(kf, (B, D), dtype=jnp.float32)
    # labels in {0, 1, 2} with one invalid (-1) entry to exercise valid_mask
    labels = jax.random.randint(kl, (B,), 0, 3, dtype=jnp.int32)
    labels = labels.at[3].set(-1)

    ref = supcon_loss_ref(features, labels)

    # Exact path (f32 MXU inputs): tight tolerance.
    loss_f32 = supcon_loss(features, labels, compute_dtype=jnp.float32)
    jax.block_until_ready(loss_f32)
    assert jnp.allclose(loss_f32, ref, rtol=1e-4, atol=1e-4), (loss_f32, ref)

    # Default fast path (bf16 MXU inputs, f32 accumulation): loose tolerance —
    # bf16 cosine similarities pick up ~1e-2 relative error before /tau.
    loss_bf16 = supcon_loss(features, labels)
    jax.block_until_ready(loss_bf16)
    assert jnp.allclose(loss_bf16, ref, rtol=5e-2, atol=5e-2), (loss_bf16, ref)

    print("KERNEL_OK")
</pallas_src>

<mosaic_0001>
module attributes {stable_mosaic.version = 11 : i64} {
  func.func @_supcon_kernel(%arg0: i32, %arg1: i32, %arg2: memref<128x128xf32, #tpu.memory_space<vmem>>, %arg3: memref<128x128xf32, #tpu.memory_space<vmem>>, %arg4: memref<1x128xi32, #tpu.memory_space<vmem>>, %arg5: memref<128x1xi32, #tpu.memory_space<vmem>>, %arg6: memref<1x128xf32, #tpu.memory_space<vmem>>, %arg7: memref<1x128xf32, #tpu.memory_space<vmem>>, %arg8: memref<1x128xf32, #tpu.memory_space<vmem>>, %arg9: memref<1x128xf32, #tpu.memory_space<vmem>>) attributes {dimension_semantics = [#tpu.dimension_semantics<parallel>, #tpu.dimension_semantics<arbitrary>], iteration_bounds = array<i64: 1, 1>, scalar_prefetch = 0 : i64, scratch_operands = 3 : i64, tpu.core_type = #tpu.core_type<tc>, window_params = [{transform_indices = @transform_0, window_bounds = array<i64: 128, 128>}, {transform_indices = @transform_1, window_bounds = array<i64: 128, 128>}, {transform_indices = @transform_2, window_bounds = array<i64: 1, 128>}, {transform_indices = @transform_3, window_bounds = array<i64: 128, 1>}, {transform_indices = @transform_4, window_bounds = array<i64: 1, 128>}]} {
    %c0_i32 = arith.constant 0 : i32
    %0 = arith.cmpi eq, %arg1, %c0_i32 : i32
    %1 = arith.extui %0 : i1 to i32
    %c0_i32_0 = arith.constant 0 : i32
    %2 = arith.cmpi ne, %1, %c0_i32_0 : i32
    scf.if %2 {
      %cst_29 = arith.constant 0.000000e+00 : f32
      %57 = vector.broadcast %cst_29 : f32 to vector<1x128xf32>
      %c0_30 = arith.constant 0 : index
      %c0_31 = arith.constant 0 : index
      %58 = vector.load %arg7[%c0_30, %c0_31] : memref<1x128xf32, #tpu.memory_space<vmem>>, vector<1x128xf32>
      tpu.vector_store %arg7[%c0_30, %c0_31], %57 {strides = array<i32>} : memref<1x128xf32, #tpu.memory_space<vmem>>, vector<1x128xf32>,
      %cst_32 = arith.constant 0.000000e+00 : f32
      %59 = vector.broadcast %cst_32 : f32 to vector<1x128xf32>
      %c0_33 = arith.constant 0 : index
      %c0_34 = arith.constant 0 : index
      %60 = vector.load %arg8[%c0_33, %c0_34] : memref<1x128xf32, #tpu.memory_space<vmem>>, vector<1x128xf32>
      tpu.vector_store %arg8[%c0_33, %c0_34], %59 {strides = array<i32>} : memref<1x128xf32, #tpu.memory_space<vmem>>, vector<1x128xf32>,
      %cst_35 = arith.constant 0.000000e+00 : f32
      %61 = vector.broadcast %cst_35 : f32 to vector<1x128xf32>
      %c0_36 = arith.constant 0 : index
      %c0_37 = arith.constant 0 : index
      %62 = vector.load %arg9[%c0_36, %c0_37] : memref<1x128xf32, #tpu.memory_space<vmem>>, vector<1x128xf32>
      tpu.vector_store %arg9[%c0_36, %c0_37], %61 {strides = array<i32>} : memref<1x128xf32, #tpu.memory_space<vmem>>, vector<1x128xf32>,
    } else {
    }
    %c0 = arith.constant 0 : index
    %c0_1 = arith.constant 0 : index
    %3 = vector.load %arg3[%c0, %c0_1] : memref<128x128xf32, #tpu.memory_space<vmem>>, vector<128x128xf32>
    %c0_2 = arith.constant 0 : index
    %c0_3 = arith.constant 0 : index
    %4 = vector.load %arg2[%c0_2, %c0_3] : memref<128x128xf32, #tpu.memory_space<vmem>>, vector<128x128xf32>
    %cst = arith.constant dense<0.000000e+00> : vector<128x128xf32>
    %5 = tpu.matmul %3, %4, %cst {dimension_numbers = #tpu.dot_dimension_numbers<[1], [1], [0], [0], [0, 0, 1, 0], [], []>} : vector<128x128xf32>, vector<128x128xf32>, vector<128x128xf32> -> vector<128x128xf32>
    %cst_4 = arith.constant 14.2857141 : f32
    %6 = vector.broadcast %cst_4 : f32 to vector<128x128xf32>
    %7 = arith.mulf %5, %6 : vector<128x128xf32>
    %c0_5 = arith.constant 0 : index
    %c0_6 = arith.constant 0 : index
    %8 = vector.load %arg5[%c0_5, %c0_6] : memref<128x1xi32, #tpu.memory_space<vmem>>, vector<128x1xi32>
    %c0_7 = arith.constant 0 : index
    %c0_8 = arith.constant 0 : index
    %9 = vector.load %arg4[%c0_7, %c0_8] : memref<1x128xi32, #tpu.memory_space<vmem>>, vector<1x128xi32>
    %10 = vector.broadcast %8 : vector<128x1xi32> to vector<128x128xi32>
    %11 = vector.broadcast %9 : vector<1x128xi32> to vector<128x128xi32>
    %12 = arith.cmpi eq, %10, %11 : vector<128x128xi32>
    %c-1_i32 = arith.constant -1 : i32
    %13 = vector.broadcast %c-1_i32 : i32 to vector<128x1xi32>
    %14 = arith.cmpi ne, %8, %13 : vector<128x1xi32>
    %15 = vector.broadcast %14 : vector<128x1xi1> to vector<128x128xi1>
    %16 = arith.andi %12, %15 : vector<128x128xi1>
    %c-1_i32_9 = arith.constant -1 : i32
    %17 = vector.broadcast %c-1_i32_9 : i32 to vector<1x128xi32>
    %18 = arith.cmpi ne, %9, %17 : vector<1x128xi32>
    %19 = vector.broadcast %18 : vector<1x128xi1> to vector<128x128xi1>
    %20 = arith.andi %16, %19 : vector<128x128xi1>
    %21 = arith.extui %20 : vector<128x128xi1> to vector<128x128xi32>
    %22 = arith.sitofp %21 : vector<128x128xi32> to vector<128x128xf32>
    %c128_i32 = arith.constant 128 : i32
    %23 = arith.muli %arg1, %c128_i32 : i32
    %24 = tpu.iota {dimensions = array<i32: 0>} : vector<128x128xi32>
    %25 = vector.broadcast %23 : i32 to vector<128x128xi32>
    %26 = arith.addi %25, %24 : vector<128x128xi32>
    %c128_i32_10 = arith.constant 128 : i32
    %27 = arith.muli %arg0, %c128_i32_10 : i32
    %28 = tpu.iota {dimensions = array<i32: 1>} : vector<128x128xi32>
    %29 = vector.broadcast %27 : i32 to vector<128x128xi32>
    %30 = arith.addi %29, %28 : vector<128x128xi32>
    %31 = arith.cmpi ne, %26, %30 : vector<128x128xi32>
    %c8_i32 = arith.constant 8 : i32
    %32 = vector.broadcast %c8_i32 : i32 to vector<128x128xi32>
    %33 = arith.cmpi slt, %26, %32 : vector<128x128xi32>
    %34 = arith.andi %31, %33 : vector<128x128xi1>
    %35 = math.exp %7 : vector<128x128xf32>
    %cst_11 = arith.constant 0.000000e+00 : f32
    %36 = vector.broadcast %cst_11 : f32 to vector<128x128xf32>
    %37 = arith.select %34, %35, %36 : vector<128x128xi1>, vector<128x128xf32>
    %c0_12 = arith.constant 0 : index
    %c0_13 = arith.constant 0 : index
    %38 = vector.load %arg7[%c0_12, %c0_13] : memref<1x128xf32, #tpu.memory_space<vmem>>, vector<1x128xf32>
    %cst_14 = arith.constant dense<0.000000e+00> : vector<128xf32>
    %39 = vector.multi_reduction <add>, %37, %cst_14 [0] : vector<128x128xf32> to vector<128xf32>
    %40 = vector.shape_cast %39 : vector<128xf32> to vector<1x128xf32>
    %41 = arith.addf %38, %40 : vector<1x128xf32>
    %c0_15 = arith.constant 0 : index
    %c0_16 = arith.constant 0 : index
    %42 = vector.load %arg7[%c0_15, %c0_16] : memref<1x128xf32, #tpu.memory_space<vmem>>, vector<1x128xf32>
    tpu.vector_store %arg7[%c0_15, %c0_16], %41 {strides = array<i32>} : memref<1x128xf32, #tpu.memory_space<vmem>>, vector<1x128xf32>,
    %c0_17 = arith.constant 0 : index
    %c0_18 = arith.constant 0 : index
    %43 = vector.load %arg8[%c0_17, %c0_18] : memref<1x128xf32, #tpu.memory_space<vmem>>, vector<1x128xf32>
    %44 = arith.mulf %22, %7 : vector<128x128xf32>
    %cst_19 = arith.constant dense<0.000000e+00> : vector<128xf32>
    %45 = vector.multi_reduction <add>, %44, %cst_19 [0] : vector<128x128xf32> to vector<128xf32>
    %46 = vector.shape_cast %45 : vector<128xf32> to vector<1x128xf32>
    %47 = arith.addf %43, %46 : vector<1x128xf32>
    %c0_20 = arith.constant 0 : index
    %c0_21 = arith.constant 0 : index
    %48 = vector.load %arg8[%c0_20, %c0_21] : memref<1x128xf32, #tpu.memory_space<vmem>>, vector<1x128xf32>
    tpu.vector_store %arg8[%c0_20, %c0_21], %47 {strides = array<i32>} : memref<1x128xf32, #tpu.memory_space<vmem>>, vector<1x128xf32>,
    %c0_22 = arith.constant 0 : index
    %c0_23 = arith.constant 0 : index
    %49 = vector.load %arg9[%c0_22, %c0_23] : memref<1x128xf32, #tpu.memory_space<vmem>>, vector<1x128xf32>
    %cst_24 = arith.constant dense<0.000000e+00> : vector<128xf32>
    %50 = vector.multi_reduction <add>, %22, %cst_24 [0] : vector<128x128xf32> to vector<128xf32>
    %51 = vector.shape_cast %50 : vector<128xf32> to vector<1x128xf32>
    %52 = arith.addf %49, %51 : vector<1x128xf32>
    %c0_25 = arith.constant 0 : index
    %c0_26 = arith.constant 0 : index
    %53 = vector.load %arg9[%c0_25, %c0_26] : memref<1x128xf32, #tpu.memory_space<vmem>>, vector<1x128xf32>
    tpu.vector_store %arg9[%c0_25, %c0_26], %52 {strides = array<i32>} : memref<1x128xf32, #tpu.memory_space<vmem>>, vector<1x128xf32>,
    %c0_i32_27 = arith.constant 0 : i32
    %54 = arith.cmpi eq, %arg1, %c0_i32_27 : i32
    %55 = arith.extui %54 : i1 to i32
    %c0_i32_28 = arith.constant 0 : i32
    %56 = arith.cmpi ne, %55, %c0_i32_28 : i32
    scf.if %56 {
      %c0_29 = arith.constant 0 : index
      %c0_30 = arith.constant 0 : index
      %57 = vector.load %arg7[%c0_29, %c0_30] : memref<1x128xf32, #tpu.memory_space<vmem>>, vector<1x128xf32>
      %c0_31 = arith.constant 0 : index
      %c0_32 = arith.constant 0 : index
      %58 = vector.load %arg8[%c0_31, %c0_32] : memref<1x128xf32, #tpu.memory_space<vmem>>, vector<1x128xf32>
      %c0_33 = arith.constant 0 : index
      %c0_34 = arith.constant 0 : index
      %59 = vector.load %arg9[%c0_33, %c0_34] : memref<1x128xf32, #tpu.memory_space<vmem>>, vector<1x128xf32>
      %cst_35 = arith.constant 9.99999993E-9 : f32
      %60 = vector.broadcast %cst_35 : f32 to vector<1x128xf32>
      %61 = arith.addf %57, %60 : vector<1x128xf32>
      %62 = math.log %61 : vector<1x128xf32>
      %63 = arith.mulf %62, %59 : vector<1x128xf32>
      %64 = arith.subf %58, %63 : vector<1x128xf32>
      %cst_36 = arith.constant 9.99999993E-9 : f32
      %65 = vector.broadcast %cst_36 : f32 to vector<1x128xf32>
      %66 = arith.addf %59, %65 : vector<1x128xf32>
      %67 = arith.divf %64, %66 : vector<1x128xf32>
      %c0_37 = arith.constant 0 : index
      %c0_38 = arith.constant 0 : index
      %68 = vector.load %arg6[%c0_37, %c0_38] : memref<1x128xf32, #tpu.memory_space<vmem>>, vector<1x128xf32>
      tpu.vector_store %arg6[%c0_37, %c0_38], %67 {strides = array<i32>} : memref<1x128xf32, #tpu.memory_space<vmem>>, vector<1x128xf32>,
    } else {
    }
    return
  }
  func.func @transform_0(%arg0: i32, %arg1: i32) -> (i32, i32) {
    %c0_i32 = arith.constant 0 : i32
    %c0_i32_0 = arith.constant 0 : i32
    return %arg0, %c0_i32 : i32, i32
  }
  func.func @transform_1(%arg0: i32, %arg1: i32) -> (i32, i32) {
    %c0_i32 = arith.constant 0 : i32
    %c0_i32_0 = arith.constant 0 : i32
    return %arg1, %c0_i32 : i32, i32
  }
  func.func @transform_2(%arg0: i32, %arg1: i32) -> (i32, i32) {
    %c0_i32 = arith.constant 0 : i32
    %c0_i32_0 = arith.constant 0 : i32
    return %c0_i32, %arg0 : i32, i32
  }
  func.func @transform_3(%arg0: i32, %arg1: i32) -> (i32, i32) {
    %c0_i32 = arith.constant 0 : i32
    %c0_i32_0 = arith.constant 0 : i32
    return %arg1, %c0_i32 : i32, i32
  }
  func.func @transform_4(%arg0: i32, %arg1: i32) -> (i32, i32) {
    %c0_i32 = arith.constant 0 : i32
    %c0_i32_0 = arith.constant 0 : i32
    return %c0_i32, %arg0 : i32, i32
  }
}

</mosaic_0001>

<llo_original>
// kernel: tpu_custom_call.1
$region0: #{tpu_custom_call.1}
  #allocation0 [shape = 'u32[]', space=smem, size = 0x4, offset = 0x4, fixed_abs, tag = 'smem constant byte address 0x4 - core index']
  #allocation1 [shape = 'u32[144,128]{1,0:T(1,128)}', space=vmem, size = 0x12000, scoped, tag = 'internal scratch']
  #allocation2 [shape = 'f32[1,128]{1,0:T(1,128)}', space=vmem, size = 0x200, scoped, tag = 'scratch operand']
  #allocation3 [shape = 'f32[1,128]{1,0:T(1,128)}', space=vmem, size = 0x200, scoped, tag = 'scratch operand']
  #allocation4 [shape = 'f32[1,128]{1,0:T(1,128)}', space=vmem, size = 0x200, scoped, tag = 'scratch operand']
  %s0 = inlined_call_operand.vmem [shape: f32[128,128], index: 0, kind: input, shape index: {}]
  %s1 = inlined_call_operand.hbm [shape: f32[128,128], index: 1, kind: input, shape index: {}]
  %s2 = inlined_call_operand.vmem [shape: s32[1,128], index: 2, kind: input, shape index: {}]
  %s3 = inlined_call_operand.vmem [shape: s32[128,1], index: 3, kind: input, shape index: {}]
  %s4 = inlined_call_operand.hbm [shape: f32[1,128], index: 4, kind: output, shape index: {}]
  %s5 = sld [smem:[#allocation0]]
  $region38: #{tpu_custom_call.1} parent=0
    _
  %s7 = ssub.s32 1, %s5
  %s8 = scalar_select 0, %s7, %s5
  $region1: #{tpu_custom_call.1} parent=0
    #allocation5 [shape = 'u8[65536]{0}', space=vmem, size = 0x10000, scoped, tag = 'input window, operand 1, single buffered']
    #allocation6 [shape = 's32[1]{0}', space=sflag, size = 0x4, scoped, tag = 'scoped memory for tpu_custom_call.1']
    #allocation7 [shape = 's32[1]{0}', space=sflag, size = 0x4, scoped, tag = 'scoped memory for tpu_custom_call.1']
    #allocation8 [shape = 'u8[512]{0}', space=vmem, size = 0x400, scoped, tag = 'output window, operand 0, single buffered']
    %9 = vsyncpa [#allocation6], 0
    %10 = vsyncpa [#allocation7], 0
    // Predicated region
    $region2: #{tpu_custom_call.1} parent=1 // pred_check
      _
    $region3: #{tpu_custom_call.1} parent=1 // pred_check_branch
      %12 = sbr.rel (0) target = $region5
    $region4: #{tpu_custom_call.1} parent=1 // pred_region
      _
    $region5: #{tpu_custom_call.1} parent=1 // pred_fallthru
      _
    // Predicated region
    $region6: #{tpu_custom_call.1} parent=1 // pred_check
      _
    $region7: #{tpu_custom_call.1} parent=1 // pred_check_branch
      %14 = sbr.rel (0) target = $region9
    $region8: #{tpu_custom_call.1} parent=1 // pred_region
      %s16 = ssub.s32 2048, 2048
      %17 = vsyncadd [#allocation6], %s16
      %s18 = sshll.u32 [#allocation5], 4
      %s19 = int_to_ptr.vmem [resolvable:$true] %s18
      %24 = dma.hbm_to_vmem [thread:$0]  %s1, 2048, %s19, [#allocation6], 128, 128, 8
    $region9: #{tpu_custom_call.1} parent=1 // pred_fallthru
      _
    // Predicated region
    $region10: #{tpu_custom_call.1} parent=1 // pred_check
      _
    $region11: #{tpu_custom_call.1} parent=1 // pred_check_branch
      %26 = sbr.rel (0) target = $region13
    $region12: #{tpu_custom_call.1} parent=1 // pred_region
      _
    $region13: #{tpu_custom_call.1} parent=1 // pred_fallthru
      _
    // Predicated region
    $region14: #{tpu_custom_call.1} parent=1 // pred_check
      _
    $region15: #{tpu_custom_call.1} parent=1 // pred_check_branch
      %28 = sbr.rel (0) target = $region17
    $region16: #{tpu_custom_call.1} parent=1 // pred_region
      _
    $region17: #{tpu_custom_call.1} parent=1 // pred_fallthru
      _
    // Predicated region
    $region18: #{tpu_custom_call.1} parent=1 // pred_check
      _
    $region19: #{tpu_custom_call.1} parent=1 // pred_check_branch
      %30 = sbr.rel (0) target = $region21
    $region20: #{tpu_custom_call.1} parent=1 // pred_region
      %31 = dma.done [#allocation6], 2048
    $region21: #{tpu_custom_call.1} parent=1 // pred_fallthru
      _
    %p32 = scmp.eq.s32.totalorder 0, 0
    // Predicated region
    $region22: #{tpu_custom_call.1} parent=1 // pred_check
      %p33 = pneg %p32
    $region23: #{tpu_custom_call.1} parent=1 // pred_check_branch
      %35 = sbr.rel (%p33) target = $region25
    $region24: #{tpu_custom_call.1} parent=1 // pred_region
      %36 = vst [vmem:[#allocation2] sm:$0x1] 0.0
      %37 = vst [vmem:[#allocation3] sm:$0x1] 0.0
      %38 = vst [vmem:[#allocation4] sm:$0x1] 0.0
    $region25: #{tpu_custom_call.1} parent=1 // pred_fallthru
      _
    %v39 = vld [vmem:[#allocation5] sm:$0xff]
    %v40 = vld [vmem:[#allocation5 + $0x8] sm:$0xff]
    %v41 = vld [vmem:[#allocation5 + $0x10] sm:$0xff]
    %v42 = vld [vmem:[#allocation5 + $0x18] sm:$0xff]
    %v43 = vld [vmem:[#allocation5 + $0x20] sm:$0xff]
    %v44 = vld [vmem:[#allocation5 + $0x28] sm:$0xff]
    %v45 = vld [vmem:[#allocation5 + $0x30] sm:$0xff]
    %v46 = vld [vmem:[#allocation5 + $0x38] sm:$0xff]
    %v47 = vld [vmem:[#allocation5 + $0x40] sm:$0xff]
    %v48 = vld [vmem:[#allocation5 + $0x48] sm:$0xff]
    %v49 = vld [vmem:[#allocation5 + $0x50] sm:$0xff]
    %v50 = vld [vmem:[#allocation5 + $0x58] sm:$0xff]
    %v51 = vld [vmem:[#allocation5 + $0x60] sm:$0xff]
    %v52 = vld [vmem:[#allocation5 + $0x68] sm:$0xff]
    %v53 = vld [vmem:[#allocation5 + $0x70] sm:$0xff]
    %v54 = vld [vmem:[#allocation5 + $0x78] sm:$0xff]
    %v55 = vld [vmem:[%s0] sm:$0xff]
    %v56 = vld [vmem:[%s0 + $0x8] sm:$0xff]
    %v57 = vld [vmem:[%s0 + $0x10] sm:$0xff]
    %v58 = vld [vmem:[%s0 + $0x18] sm:$0xff]
    %v59 = vld [vmem:[%s0 + $0x20] sm:$0xff]
    %v60 = vld [vmem:[%s0 + $0x28] sm:$0xff]
    %v61 = vld [vmem:[%s0 + $0x30] sm:$0xff]
    %v62 = vld [vmem:[%s0 + $0x38] sm:$0xff]
    %v63 = vld [vmem:[%s0 + $0x40] sm:$0xff]
    %v64 = vld [vmem:[%s0 + $0x48] sm:$0xff]
    %v65 = vld [vmem:[%s0 + $0x50] sm:$0xff]
    %v66 = vld [vmem:[%s0 + $0x58] sm:$0xff]
    %v67 = vld [vmem:[%s0 + $0x60] sm:$0xff]
    %v68 = vld [vmem:[%s0 + $0x68] sm:$0xff]
    %v69 = vld [vmem:[%s0 + $0x70] sm:$0xff]
    %v70 = vld [vmem:[%s0 + $0x78] sm:$0xff]
    %71 = vmatprep.subr.mxu0 0.0
    %72 = vmatpush1.xpose.msra.mxu0 %v55
    %73 = vmatprep.subr.mxu0 0.0
    %74 = vmatpush1.xpose.msra.mxu0 %v56
    %75 = vmatprep.subr.mxu0 0.0
    %76 = vmatpush1.xpose.msra.mxu0 %v57
    %77 = vmatprep.subr.mxu0 0.0
    %78 = vmatpush1.xpose.msra.mxu0 %v58
    %79 = vmatprep.subr.mxu0 0.0
    %80 = vmatpush1.xpose.msra.mxu0 %v59
    %81 = vmatprep.subr.mxu0 0.0
    %82 = vmatpush1.xpose.msra.mxu0 %v60
    %83 = vmatprep.subr.mxu0 0.0
    %84 = vmatpush1.xpose.msra.mxu0 %v61
    %85 = vmatprep.subr.mxu0 0.0
    %86 = vmatpush1.xpose.msra.mxu0 %v62
    %87 = vmatprep.subr.mxu0 0.0
    %88 = vmatpush1.xpose.msra.mxu0 %v63
    %89 = vmatprep.subr.mxu0 0.0
    %90 = vmatpush1.xpose.msra.mxu0 %v64
    %91 = vmatprep.subr.mxu0 0.0
    %92 = vmatpush1.xpose.msra.mxu0 %v65
    %93 = vmatprep.subr.mxu0 0.0
    %94 = vmatpush1.xpose.msra.mxu0 %v66
    %95 = vmatprep.subr.mxu0 0.0
    %96 = vmatpush1.xpose.msra.mxu0 %v67
    %97 = vmatprep.subr.mxu0 0.0
    %98 = vmatpush1.xpose.msra.mxu0 %v68
    %99 = vmatprep.subr.mxu0 0.0
    %100 = vmatpush1.xpose.msra.mxu0 %v69
    %101 = vmatprep.subr.mxu0 0.0
    %102 = vmatpush1.xpose.msra.mxu0 %v70
    %103 = vmatprep.subr.mxu0 0.0
    %104 = vmatpush1.xpose.msra.mxu0 0.0
    %105 = vmatprep.subr.mxu0 0.0
    %106 = vmatpush1.xpose.msra.mxu0 0.0
    %107 = vmatprep.subr.mxu0 0.0
    %108 = vmatpush1.xpose.msra.mxu0 0.0
    %109 = vmatprep.subr.mxu0 0.0
    %110 = vmatpush1.xpose.msra.mxu0 0.0
    %111 = vmatprep.subr.mxu0 0.0
    %112 = vmatpush1.xpose.msra.mxu0 0.0
    %113 = vmatprep.subr.mxu0 0.0
    %114 = vmatpush1.xpose.msra.mxu0 0.0
    %115 = vmatprep.subr.mxu0 0.0
    %116 = vmatpush1.xpose.msra.mxu0 0.0
    %117 = vmatprep.subr.mxu0 0.0
    %118 = vmatpush1.xpose.msra.mxu0 0.0
    %119 = vmatprep.subr.mxu0 0.0
    %120 = vmatpush1.xpose.msra.mxu0 0.0
    %121 = vmatprep.subr.mxu0 0.0
    %122 = vmatpush1.xpose.msra.mxu0 0.0
    %123 = vmatprep.subr.mxu0 0.0
    %124 = vmatpush1.xpose.msra.mxu0 0.0
    %125 = vmatprep.subr.mxu0 0.0
    %126 = vmatpush1.xpose.msra.mxu0 0.0
    %127 = vmatprep.subr.mxu0 0.0
    %128 = vmatpush1.xpose.msra.mxu0 0.0
    %129 = vmatprep.subr.mxu0 0.0
    %130 = vmatpush1.xpose.msra.mxu0 0.0
    %131 = vmatprep.subr.mxu0 0.0
    %132 = vmatpush1.xpose.msra.mxu0 0.0
    %133 = vmatprep.subr.mxu0 0.0
    %134 = vmatpush1.xpose.msra.mxu0 0.0
    %135 = vmatprep.mubr.f32.mxu0 0.0
    %136 = vmatmul.mubr.f32.gmra.mrb[0].mxu0 %v39
    %v137 = vpop.f32.mrb[0].mxu0
    %v138 = vadd.f32 0.0, %v137
    %v139 = vpop.f32.mrb[0].mxu0
    %140 = vmatprep.mubr.f32.mxu0 0.0
    %141 = vmatmul.mubr.f32.gmra.mrb[0].mxu0 %v40
    %v142 = vpop.f32.mrb[0].mxu0
    %v143 = vadd.f32 0.0, %v142
    %v144 = vpop.f32.mrb[0].mxu0
    %145 = vmatprep.mubr.f32.mxu0 0.0
    %146 = vmatmul.mubr.f32.gmra.mrb[0].mxu0 %v41
    %v147 = vpop.f32.mrb[0].mxu0
    %v148 = vadd.f32 0.0, %v147
    %v149 = vpop.f32.mrb[0].mxu0
    %150 = vmatprep.mubr.f32.mxu0 0.0
    %151 = vmatmul.mubr.f32.gmra.mrb[0].mxu0 %v42
    %v152 = vpop.f32.mrb[0].mxu0
    %v153 = vadd.f32 0.0, %v152
    %v154 = vpop.f32.mrb[0].mxu0
    %155 = vmatprep.mubr.f32.mxu0 0.0
    %156 = vmatmul.mubr.f32.gmra.mrb[0].mxu0 %v43
    %v157 = vpop.f32.mrb[0].mxu0
    %v158 = vadd.f32 0.0, %v157
    %v159 = vpop.f32.mrb[0].mxu0
    %160 = vmatprep.mubr.f32.mxu0 0.0
    %161 = vmatmul.mubr.f32.gmra.mrb[0].mxu0 %v44
    %v162 = vpop.f32.mrb[0].mxu0
    %v163 = vadd.f32 0.0, %v162
    %v164 = vpop.f32.mrb[0].mxu0
    %165 = vmatprep.mubr.f32.mxu0 0.0
    %166 = vmatmul.mubr.f32.gmra.mrb[0].mxu0 %v45
    %v167 = vpop.f32.mrb[0].mxu0
    %v168 = vadd.f32 0.0, %v167
    %v169 = vpop.f32.mrb[0].mxu0
    %170 = vmatprep.mubr.f32.mxu0 0.0
    %171 = vmatmul.mubr.f32.gmra.mrb[0].mxu0 %v46
    %v172 = vpop.f32.mrb[0].mxu0
    %v173 = vadd.f32 0.0, %v172
    %v174 = vpop.f32.mrb[0].mxu0
    %175 = vmatprep.mubr.f32.mxu0 0.0
    %176 = vmatmul.mubr.f32.gmra.mrb[0].mxu0 %v47
    %v177 = vpop.f32.mrb[0].mxu0
    %v178 = vadd.f32 0.0, %v177
    %v179 = vpop.f32.mrb[0].mxu0
    %180 = vmatprep.mubr.f32.mxu0 0.0
    %181 = vmatmul.mubr.f32.gmra.mrb[0].mxu0 %v48
    %v182 = vpop.f32.mrb[0].mxu0
    %v183 = vadd.f32 0.0, %v182
    %v184 = vpop.f32.mrb[0].mxu0
    %185 = vmatprep.mubr.f32.mxu0 0.0
    %186 = vmatmul.mubr.f32.gmra.mrb[0].mxu0 %v49
    %v187 = vpop.f32.mrb[0].mxu0
    %v188 = vadd.f32 0.0, %v187
    %v189 = vpop.f32.mrb[0].mxu0
    %190 = vmatprep.mubr.f32.mxu0 0.0
    %191 = vmatmul.mubr.f32.gmra.mrb[0].mxu0 %v50
    %v192 = vpop.f32.mrb[0].mxu0
    %v193 = vadd.f32 0.0, %v192
    %v194 = vpop.f32.mrb[0].mxu0
    %195 = vmatprep.mubr.f32.mxu0 0.0
    %196 = vmatmul.mubr.f32.gmra.mrb[0].mxu0 %v51
    %v197 = vpop.f32.mrb[0].mxu0
    %v198 = vadd.f32 0.0, %v197
    %v199 = vpop.f32.mrb[0].mxu0
    %200 = vmatprep.mubr.f32.mxu0 0.0
    %201 = vmatmul.mubr.f32.gmra.mrb[0].mxu0 %v52
    %v202 = vpop.f32.mrb[0].mxu0
    %v203 = vadd.f32 0.0, %v202
    %v204 = vpop.f32.mrb[0].mxu0
    %205 = vmatprep.mubr.f32.mxu0 0.0
    %206 = vmatmul.mubr.f32.gmra.mrb[0].mxu0 %v53
    %v207 = vpop.f32.mrb[0].mxu0
    %v208 = vadd.f32 0.0, %v207
    %v209 = vpop.f32.mrb[0].mxu0
    %210 = vmatprep.mubr.f32.mxu0 0.0
    %211 = vmatmul.mubr.f32.gmra.mrb[0].mxu0 %v54
    %v212 = vpop.f32.mrb[0].mxu0
    %v213 = vadd.f32 0.0, %v212
    %v214 = vpop.f32.mrb[0].mxu0
    %215 = vdwg.mxu0
    %v216 = vmul.f32 %v138, 14.285714
    %v217 = vmul.f32 %v143, 14.285714
    %v218 = vmul.f32 %v148, 14.285714
    %v219 = vmul.f32 %v153, 14.285714
    %v220 = vmul.f32 %v158, 14.285714
    %v221 = vmul.f32 %v163, 14.285714
    %v222 = vmul.f32 %v168, 14.285714
    %v223 = vmul.f32 %v173, 14.285714
    %v224 = vmul.f32 %v178, 14.285714
    %v225 = vmul.f32 %v183, 14.285714
    %v226 = vmul.f32 %v188, 14.285714
    %v227 = vmul.f32 %v193, 14.285714
    %v228 = vmul.f32 %v198, 14.285714
    %v229 = vmul.f32 %v203, 14.285714
    %v230 = vmul.f32 %v208, 14.285714
    %v231 = vmul.f32 %v213, 14.285714
    %v232 = vld [vmem:[%s3] sm:$0xff]
    %v233 = vld [vmem:[%s3 + $0x8] sm:$0xff]
    %v234 = vld [vmem:[%s3 + $0x10] sm:$0xff]
    %v235 = vld [vmem:[%s3 + $0x18] sm:$0xff]
    %v236 = vld [vmem:[%s3 + $0x20] sm:$0xff]
    %v237 = vld [vmem:[%s3 + $0x28] sm:$0xff]
    %v238 = vld [vmem:[%s3 + $0x30] sm:$0xff]
    %v239 = vld [vmem:[%s3 + $0x38] sm:$0xff]
    %v240 = vld [vmem:[%s3 + $0x40] sm:$0xff]
    %v241 = vld [vmem:[%s3 + $0x48] sm:$0xff]
    %v242 = vld [vmem:[%s3 + $0x50] sm:$0xff]
    %v243 = vld [vmem:[%s3 + $0x58] sm:$0xff]
    %v244 = vld [vmem:[%s3 + $0x60] sm:$0xff]
    %v245 = vld [vmem:[%s3 + $0x68] sm:$0xff]
    %v246 = vld [vmem:[%s3 + $0x70] sm:$0xff]
    %v247 = vld [vmem:[%s3 + $0x78] sm:$0xff]
    %v248 = vld [vmem:[%s2] sm:$0x1]
    %249 = vset.pattern.permute.xlu0 0
    %250 = vperm.xlu0 %249, %v232
    %v251 = vpop.permute.xlu0 %250
    %252 = vset.pattern.permute.xlu0 0
    %253 = vperm.xlu0 %252, %v233
    %v254 = vpop.permute.xlu0 %253
    %255 = vset.pattern.permute.xlu0 0
    %256 = vperm.xlu0 %255, %v234
    %v257 = vpop.permute.xlu0 %256
    %258 = vset.pattern.permute.xlu0 0
    %259 = vperm.xlu0 %258, %v235
    %v260 = vpop.permute.xlu0 %259
    %261 = vset.pattern.permute.xlu0 0
    %262 = vperm.xlu0 %261, %v236
    %v263 = vpop.permute.xlu0 %262
    %264 = vset.pattern.permute.xlu0 0
    %265 = vperm.xlu0 %264, %v237
    %v266 = vpop.permute.xlu0 %265
    %267 = vset.pattern.permute.xlu0 0
    %268 = vperm.xlu0 %267, %v238
    %v269 = vpop.permute.xlu0 %268
    %270 = vset.pattern.permute.xlu0 0
    %271 = vperm.xlu0 %270, %v239
    %v272 = vpop.permute.xlu0 %271
    %273 = vset.pattern.permute.xlu0 0
    %274 = vperm.xlu0 %273, %v240
    %v275 = vpop.permute.xlu0 %274
    %276 = vset.pattern.permute.xlu0 0
    %277 = vperm.xlu0 %276, %v241
    %v278 = vpop.permute.xlu0 %277
    %279 = vset.pattern.permute.xlu0 0
    %280 = vperm.xlu0 %279, %v242
    %v281 = vpop.permute.xlu0 %280
    %282 = vset.pattern.permute.xlu0 0
    %283 = vperm.xlu0 %282, %v243
    %v284 = vpop.permute.xlu0 %283
    %285 = vset.pattern.permute.xlu0 0
    %286 = vperm.xlu0 %285, %v244
    %v287 = vpop.permute.xlu0 %286
    %288 = vset.pattern.permute.xlu0 0
    %289 = vperm.xlu0 %288, %v245
    %v290 = vpop.permute.xlu0 %289
    %291 = vset.pattern.permute.xlu0 0
    %292 = vperm.xlu0 %291, %v246
    %v293 = vpop.permute.xlu0 %292
    %294 = vset.pattern.permute.xlu0 0
    %295 = vperm.xlu0 %294, %v247
    %v296 = vpop.permute.xlu0 %295
    %v297 = vlaneseq
    %v298 = vshrl.u32 %v297, 7
    %v299 = vsub.s32 0, %v298
    %v300 = vrot.slane %v248, %v299
    %vm301 = vcmp.eq.s32.totalorder %v251, %v300
    %vm302 = vcmp.eq.s32.totalorder %v254, %v300
    %vm303 = vcmp.eq.s32.totalorder %v257, %v300
    %vm304 = vcmp.eq.s32.totalorder %v260, %v300
    %vm305 = vcmp.eq.s32.totalorder %v263, %v300
    %vm306 = vcmp.eq.s32.totalorder %v266, %v300
    %vm307 = vcmp.eq.s32.totalorder %v269, %v300
    %vm308 = vcmp.eq.s32.totalorder %v272, %v300
    %vm309 = vcmp.eq.s32.totalorder %v275, %v300
    %vm310 = vcmp.eq.s32.totalorder %v278, %v300
    %vm311 = vcmp.eq.s32.totalorder %v281, %v300
    %vm312 = vcmp.eq.s32.totalorder %v284, %v300
    %vm313 = vcmp.eq.s32.totalorder %v287, %v300
    %vm314 = vcmp.eq.s32.totalorder %v290, %v300
    %vm315 = vcmp.eq.s32.totalorder %v293, %v300
    %vm316 = vcmp.eq.s32.totalorder %v296, %v300
    %vm317 = vcmp.ne.s32.totalorder %v232, 4294967295
    %vm318 = vcmp.ne.s32.totalorder %v233, 4294967295
    %vm319 = vcmp.ne.s32.totalorder %v234, 4294967295
    %vm320 = vcmp.ne.s32.totalorder %v235, 4294967295
    %vm321 = vcmp.ne.s32.totalorder %v236, 4294967295
    %vm322 = vcmp.ne.s32.totalorder %v237, 4294967295
    %vm323 = vcmp.ne.s32.totalorder %v238, 4294967295
    %vm324 = vcmp.ne.s32.totalorder %v239, 4294967295
    %vm325 = vcmp.ne.s32.totalorder %v240, 4294967295
    %vm326 = vcmp.ne.s32.totalorder %v241, 4294967295
    %vm327 = vcmp.ne.s32.totalorder %v242, 4294967295
    %vm328 = vcmp.ne.s32.totalorder %v243, 4294967295
    %vm329 = vcmp.ne.s32.totalorder %v244, 4294967295
    %vm330 = vcmp.ne.s32.totalorder %v245, 4294967295
    %vm331 = vcmp.ne.s32.totalorder %v246, 4294967295
    %vm332 = vcmp.ne.s32.totalorder %v247, 4294967295
    %v333 = vsel %vm317, 1, 0
    %v334 = vsel %vm318, 1, 0
    %v335 = vsel %vm319, 1, 0
    %v336 = vsel %vm320, 1, 0
    %v337 = vsel %vm321, 1, 0
    %v338 = vsel %vm322, 1, 0
    %v339 = vsel %vm323, 1, 0
    %v340 = vsel %vm324, 1, 0
    %v341 = vsel %vm325, 1, 0
    %v342 = vsel %vm326, 1, 0
    %v343 = vsel %vm327, 1, 0
    %v344 = vsel %vm328, 1, 0
    %v345 = vsel %vm329, 1, 0
    %v346 = vsel %vm330, 1, 0
    %v347 = vsel %vm331, 1, 0
    %v348 = vsel %vm332, 1, 0
    %349 = vset.pattern.permute.xlu0 0
    %350 = vperm.xlu0 %349, %v333
    %v351 = vpop.permute.xlu0 %350
    %352 = vset.pattern.permute.xlu0 0
    %353 = vperm.xlu0 %352, %v334
    %v354 = vpop.permute.xlu0 %353
    %355 = vset.pattern.permute.xlu0 0
    %356 = vperm.xlu0 %355, %v335
    %v357 = vpop.permute.xlu0 %356
    %358 = vset.pattern.permute.xlu0 0
    %359 = vperm.xlu0 %358, %v336
    %v360 = vpop.permute.xlu0 %359
    %361 = vset.pattern.permute.xlu0 0
    %362 = vperm.xlu0 %361, %v337
    %v363 = vpop.permute.xlu0 %362
    %364 = vset.pattern.permute.xlu0 0
    %365 = vperm.xlu0 %364, %v338
    %v366 = vpop.permute.xlu0 %365
    %367 = vset.pattern.permute.xlu0 0
    %368 = vperm.xlu0 %367, %v339
    %v369 = vpop.permute.xlu0 %368
    %370 = vset.pattern.permute.xlu0 0
    %371 = vperm.xlu0 %370, %v340
    %v372 = vpop.permute.xlu0 %371
    %373 = vset.pattern.permute.xlu0 0
    %374 = vperm.xlu0 %373, %v341
    %v375 = vpop.permute.xlu0 %374
    %376 = vset.pattern.permute.xlu0 0
    %377 = vperm.xlu0 %376, %v342
    %v378 = vpop.permute.xlu0 %377
    %379 = vset.pattern.permute.xlu0 0
    %380 = vperm.xlu0 %379, %v343
    %v381 = vpop.permute.xlu0 %380
    %382 = vset.pattern.permute.xlu0 0
    %383 = vperm.xlu0 %382, %v344
    %v384 = vpop.permute.xlu0 %383
    %385 = vset.pattern.permute.xlu0 0
    %386 = vperm.xlu0 %385, %v345
    %v387 = vpop.permute.xlu0 %386
    %388 = vset.pattern.permute.xlu0 0
    %389 = vperm.xlu0 %388, %v346
    %v390 = vpop.permute.xlu0 %389
    %391 = vset.pattern.permute.xlu0 0
    %392 = vperm.xlu0 %391, %v347
    %v393 = vpop.permute.xlu0 %392
    %394 = vset.pattern.permute.xlu0 0
    %395 = vperm.xlu0 %394, %v348
    %v396 = vpop.permute.xlu0 %395
    %vm397 = vcmp.eq.s32.totalorder %v351, 1
    %vm398 = vcmp.eq.s32.totalorder %v354, 1
    %vm399 = vcmp.eq.s32.totalorder %v357, 1
    %vm400 = vcmp.eq.s32.totalorder %v360, 1
    %vm401 = vcmp.eq.s32.totalorder %v363, 1
    %vm402 = vcmp.eq.s32.totalorder %v366, 1
    %vm403 = vcmp.eq.s32.totalorder %v369, 1
    %vm404 = vcmp.eq.s32.totalorder %v372, 1
    %vm405 = vcmp.eq.s32.totalorder %v375, 1
    %vm406 = vcmp.eq.s32.totalorder %v378, 1
    %vm407 = vcmp.eq.s32.totalorder %v381, 1
    %vm408 = vcmp.eq.s32.totalorder %v384, 1
    %vm409 = vcmp.eq.s32.totalorder %v387, 1
    %vm410 = vcmp.eq.s32.totalorder %v390, 1
    %vm411 = vcmp.eq.s32.totalorder %v393, 1
    %vm412 = vcmp.eq.s32.totalorder %v396, 1
    %vm413 = vmand %vm301, %vm397
    %vm414 = vmand %vm302, %vm398
    %vm415 = vmand %vm303, %vm399
    %vm416 = vmand %vm304, %vm400
    %vm417 = vmand %vm305, %vm401
    %vm418 = vmand %vm306, %vm402
    %vm419 = vmand %vm307, %vm403
    %vm420 = vmand %vm308, %vm404
    %vm421 = vmand %vm309, %vm405
    %vm422 = vmand %vm310, %vm406
    %vm423 = vmand %vm311, %vm407
    %vm424 = vmand %vm312, %vm408
    %vm425 = vmand %vm313, %vm409
    %vm426 = vmand %vm314, %vm410
    %vm427 = vmand %vm315, %vm411
    %vm428 = vmand %vm316, %vm412
    %vm429 = vcmp.ne.s32.totalorder %v248, 4294967295
    %v430 = vsel %vm429, 1, 0
    %v431 = vlaneseq
    %v432 = vshrl.u32 %v431, 7
    %v433 = vsub.s32 0, %v432
    %v434 = vrot.slane %v430, %v433
    %vm435 = vcmp.eq.s32.totalorder %v434, 1
    %vm436 = vmand %vm413, %vm435
    %vm437 = vmand %vm414, %vm435
    %vm438 = vmand %vm415, %vm435
    %vm439 = vmand %vm416, %vm435
    %vm440 = vmand %vm417, %vm435
    %vm441 = vmand %vm418, %vm435
    %vm442 = vmand %vm419, %vm435
    %vm443 = vmand %vm420, %vm435
    %vm444 = vmand %vm421, %vm435
    %vm445 = vmand %vm422, %vm435
    %vm446 = vmand %vm423, %vm435
    %vm447 = vmand %vm424, %vm435
    %vm448 = vmand %vm425, %vm435
    %vm449 = vmand %vm426, %vm435
    %vm450 = vmand %vm427, %vm435
    %vm451 = vmand %vm428, %vm435
    %v452 = vsel %vm436, 1, 0
    %v453 = vsel %vm437, 1, 0
    %v454 = vsel %vm438, 1, 0
    %v455 = vsel %vm439, 1, 0
    %v456 = vsel %vm440, 1, 0
    %v457 = vsel %vm441, 1, 0
    %v458 = vsel %vm442, 1, 0
    %v459 = vsel %vm443, 1, 0
    %v460 = vsel %vm444, 1, 0
    %v461 = vsel %vm445, 1, 0
    %v462 = vsel %vm446, 1, 0
    %v463 = vsel %vm447, 1, 0
    %v464 = vsel %vm448, 1, 0
    %v465 = vsel %vm449, 1, 0
    %v466 = vsel %vm450, 1, 0
    %v467 = vsel %vm451, 1, 0
    %v468 = vcvt.s32.f32 %v452
    %v469 = vcvt.s32.f32 %v453
    %v470 = vcvt.s32.f32 %v454
    %v471 = vcvt.s32.f32 %v455
    %v472 = vcvt.s32.f32 %v456
    %v473 = vcvt.s32.f32 %v457
    %v474 = vcvt.s32.f32 %v458
    %v475 = vcvt.s32.f32 %v459
    %v476 = vcvt.s32.f32 %v460
    %v477 = vcvt.s32.f32 %v461
    %v478 = vcvt.s32.f32 %v462
    %v479 = vcvt.s32.f32 %v463
    %v480 = vcvt.s32.f32 %v464
    %v481 = vcvt.s32.f32 %v465
    %v482 = vcvt.s32.f32 %v466
    %v483 = vcvt.s32.f32 %v467
    %s484 = smul.u32 0, 128
    %v485 = vlaneseq
    %v486 = vshrl.u32 %v485, 7
    %v487 = vadd.s32 %v486, 8
    %v488 = vadd.s32 %v486, 16
    %v489 = vadd.s32 %v486, 24
    %v490 = vadd.s32 %v486, 32
    %v491 = vadd.s32 %v486, 40
    %v492 = vadd.s32 %v486, 48
    %v493 = vadd.s32 %v486, 56
    %v494 = vadd.s32 %v486, 64
    %v495 = vadd.s32 %v486, 72
    %v496 = vadd.s32 %v486, 80
    %v497 = vadd.s32 %v486, 88
    %v498 = vadd.s32 %v486, 96
    %v499 = vadd.s32 %v486, 104
    %v500 = vadd.s32 %v486, 112
    %v501 = vadd.s32 %v486, 120
    %v502 = vstv %s484
    %v503 = vadd.s32 %v502, %v486
    %v504 = vadd.s32 %v502, %v487
    %v505 = vadd.s32 %v502, %v488
    %v506 = vadd.s32 %v502, %v489
    %v507 = vadd.s32 %v502, %v490
    %v508 = vadd.s32 %v502, %v491
    %v509 = vadd.s32 %v502, %v492
    %v510 = vadd.s32 %v502, %v493
    %v511 = vadd.s32 %v502, %v494
    %v512 = vadd.s32 %v502, %v495
    %v513 = vadd.s32 %v502, %v496
    %v514 = vadd.s32 %v502, %v497
    %v515 = vadd.s32 %v502, %v498
    %v516 = vadd.s32 %v502, %v499
    %v517 = vadd.s32 %v502, %v500
    %v518 = vadd.s32 %v502, %v501
    %s519 = smul.u32 0, 128
    %v520 = vlaneseq
    %v521 = vand.u32 %v520, 127
    %v522 = vstv %s519
    %v523 = vadd.s32 %v522, %v521
    %vm524 = vcmp.ne.s32.totalorder %v503, %v523
    %vm525 = vcmp.ne.s32.totalorder %v504, %v523
    %vm526 = vcmp.ne.s32.totalorder %v505, %v523
    %vm527 = vcmp.ne.s32.totalorder %v506, %v523
    %vm528 = vcmp.ne.s32.totalorder %v507, %v523
    %vm529 = vcmp.ne.s32.totalorder %v508, %v523
    %vm530 = vcmp.ne.s32.totalorder %v509, %v523
    %vm531 = vcmp.ne.s32.totalorder %v510, %v523
    %vm532 = vcmp.ne.s32.totalorder %v511, %v523
    %vm533 = vcmp.ne.s32.totalorder %v512, %v523
    %vm534 = vcmp.ne.s32.totalorder %v513, %v523
    %vm535 = vcmp.ne.s32.totalorder %v514, %v523
    %vm536 = vcmp.ne.s32.totalorder %v515, %v523
    %vm537 = vcmp.ne.s32.totalorder %v516, %v523
    %vm538 = vcmp.ne.s32.totalorder %v517, %v523
    %vm539 = vcmp.ne.s32.totalorder %v518, %v523
    %vm540 = vcmp.lt.s32.totalorder %v503, 8
    %vm541 = vcmp.lt.s32.totalorder %v504, 8
    %vm542 = vcmp.lt.s32.totalorder %v505, 8
    %vm543 = vcmp.lt.s32.totalorder %v506, 8
    %vm544 = vcmp.lt.s32.totalorder %v507, 8
    %vm545 = vcmp.lt.s32.totalorder %v508, 8
    %vm546 = vcmp.lt.s32.totalorder %v509, 8
    %vm547 = vcmp.lt.s32.totalorder %v510, 8
    %vm548 = vcmp.lt.s32.totalorder %v511, 8
    %vm549 = vcmp.lt.s32.totalorder %v512, 8
    %vm550 = vcmp.lt.s32.totalorder %v513, 8
    %vm551 = vcmp.lt.s32.totalorder %v514, 8
    %vm552 = vcmp.lt.s32.totalorder %v515, 8
    %vm553 = vcmp.lt.s32.totalorder %v516, 8
    %vm554 = vcmp.lt.s32.totalorder %v517, 8
    %vm555 = vcmp.lt.s32.totalorder %v518, 8
    %vm556 = vmand %vm524, %vm540
    %vm557 = vmand %vm525, %vm541
    %vm558 = vmand %vm526, %vm542
    %vm559 = vmand %vm527, %vm543
    %vm560 = vmand %vm528, %vm544
    %vm561 = vmand %vm529, %vm545
    %vm562 = vmand %vm530, %vm546
    %vm563 = vmand %vm531, %vm547
    %vm564 = vmand %vm532, %vm548
    %vm565 = vmand %vm533, %vm549
    %vm566 = vmand %vm534, %vm550
    %vm567 = vmand %vm535, %vm551
    %vm568 = vmand %vm536, %vm552
    %vm569 = vmand %vm537, %vm553
    %vm570 = vmand %vm538, %vm554
    %vm571 = vmand %vm539, %vm555
    %v572 = vmul.f32 %v216, 1.442695
    %v573 = vpow.pop %v572
    %v574 = vmul.f32 %v217, 1.442695
    %v575 = vpow.pop %v574
    %v576 = vmul.f32 %v218, 1.442695
    %v577 = vpow.pop %v576
    %v578 = vmul.f32 %v219, 1.442695
    %v579 = vpow.pop %v578
    %v580 = vmul.f32 %v220, 1.442695
    %v581 = vpow.pop %v580
    %v582 = vmul.f32 %v221, 1.442695
    %v583 = vpow.pop %v582
    %v584 = vmul.f32 %v222, 1.442695
    %v585 = vpow.pop %v584
    %v586 = vmul.f32 %v223, 1.442695
    %v587 = vpow.pop %v586
    %v588 = vmul.f32 %v224, 1.442695
    %v589 = vpow.pop %v588
    %v590 = vmul.f32 %v225, 1.442695
    %v591 = vpow.pop %v590
    %v592 = vmul.f32 %v226, 1.442695
    %v593 = vpow.pop %v592
    %v594 = vmul.f32 %v227, 1.442695
    %v595 = vpow.pop %v594
    %v596 = vmul.f32 %v228, 1.442695
    %v597 = vpow.pop %v596
    %v598 = vmul.f32 %v229, 1.442695
    %v599 = vpow.pop %v598
    %v600 = vmul.f32 %v230, 1.442695
    %v601 = vpow.pop %v600
    %v602 = vmul.f32 %v231, 1.442695
    %v603 = vpow.pop %v602
    %v604 = vsel %vm556, %v573, 0.0
    %v605 = vsel %vm557, %v575, 0.0
    %v606 = vsel %vm558, %v577, 0.0
    %v607 = vsel %vm559, %v579, 0.0
    %v608 = vsel %vm560, %v581, 0.0
    %v609 = vsel %vm561, %v583, 0.0
    %v610 = vsel %vm562, %v585, 0.0
    %v611 = vsel %vm563, %v587, 0.0
    %v612 = vsel %vm564, %v589, 0.0
    %v613 = vsel %vm565, %v591, 0.0
    %v614 = vsel %vm566, %v593, 0.0
    %v615 = vsel %vm567, %v595, 0.0
    %v616 = vsel %vm568, %v597, 0.0
    %v617 = vsel %vm569, %v599, 0.0
    %v618 = vsel %vm570, %v601, 0.0
    %v619 = vsel %vm571, %v603, 0.0
    %v620 = vld [vmem:[#allocation2] sm:$0x1]
    %v621 = vadd.f32 %v604, %v605
    %v622 = vadd.f32 %v621, %v606
    %v623 = vadd.f32 %v622, %v607
    %v624 = vadd.f32 %v623, %v608
    %v625 = vadd.f32 %v624, %v609
    %v626 = vadd.f32 %v625, %v610
    %v627 = vadd.f32 %v626, %v611
    %v628 = vadd.f32 %v627, %v612
    %v629 = vadd.f32 %v628, %v613
    %v630 = vadd.f32 %v629, %v614
    %v631 = vadd.f32 %v630, %v615
    %v632 = vadd.f32 %v631, %v616
    %v633 = vadd.f32 %v632, %v617
    %v634 = vadd.f32 %v633, %v618
    %v635 = vadd.f32 %v634, %v619
    %v636 = vrot.slane %v635, 4
    %v637 = vadd.f32 %v635, %v636
    %v638 = vrot.slane %v637, 2
    %v639 = vadd.f32 %v637, %v638
    %v640 = vrot.slane %v639, 1
    %v641 = vadd.f32 %v639, %v640
    %v642 = vadd.f32 %v620, %v641
    %643 = vst [vmem:[#allocation2] sm:$0x1] %v642
    %v644 = vld [vmem:[#allocation3] sm:$0x1]
    %v645 = vmul.f32 %v468, %v216
    %v646 = vmul.f32 %v469, %v217
    %v647 = vmul.f32 %v470, %v218
    %v648 = vmul.f32 %v471, %v219
    %v649 = vmul.f32 %v472, %v220
    %v650 = vmul.f32 %v473, %v221
    %v651 = vmul.f32 %v474, %v222
    %v652 = vmul.f32 %v475, %v223
    %v653 = vmul.f32 %v476, %v224
    %v654 = vmul.f32 %v477, %v225
    %v655 = vmul.f32 %v478, %v226
    %v656 = vmul.f32 %v479, %v227
    %v657 = vmul.f32 %v480, %v228
    %v658 = vmul.f32 %v481, %v229
    %v659 = vmul.f32 %v482, %v230
    %v660 = vmul.f32 %v483, %v231
    %v661 = vadd.f32 %v645, %v646
    %v662 = vadd.f32 %v661, %v647
    %v663 = vadd.f32 %v662, %v648
    %v664 = vadd.f32 %v663, %v649
    %v665 = vadd.f32 %v664, %v650
    %v666 = vadd.f32 %v665, %v651
    %v667 = vadd.f32 %v666, %v652
    %v668 = vadd.f32 %v667, %v653
    %v669 = vadd.f32 %v668, %v654
    %v670 = vadd.f32 %v669, %v655
    %v671 = vadd.f32 %v670, %v656
    %v672 = vadd.f32 %v671, %v657
    %v673 = vadd.f32 %v672, %v658
    %v674 = vadd.f32 %v673, %v659
    %v675 = vadd.f32 %v674, %v660
    %v676 = vrot.slane %v675, 4
    %v677 = vadd.f32 %v675, %v676
    %v678 = vrot.slane %v677, 2
    %v679 = vadd.f32 %v677, %v678
    %v680 = vrot.slane %v679, 1
    %v681 = vadd.f32 %v679, %v680
    %v682 = vadd.f32 %v644, %v681
    %683 = vst [vmem:[#allocation3] sm:$0x1] %v682
    %v684 = vld [vmem:[#allocation4] sm:$0x1]
    %v685 = vadd.f32 %v468, %v469
    %v686 = vadd.f32 %v685, %v470
    %v687 = vadd.f32 %v686, %v471
    %v688 = vadd.f32 %v687, %v472
    %v689 = vadd.f32 %v688, %v473
    %v690 = vadd.f32 %v689, %v474
    %v691 = vadd.f32 %v690, %v475
    %v692 = vadd.f32 %v691, %v476
    %v693 = vadd.f32 %v692, %v477
    %v694 = vadd.f32 %v693, %v478
    %v695 = vadd.f32 %v694, %v479
    %v696 = vadd.f32 %v695, %v480
    %v697 = vadd.f32 %v696, %v481
    %v698 = vadd.f32 %v697, %v482
    %v699 = vadd.f32 %v698, %v483
    %v700 = vrot.slane %v699, 4
    %v701 = vadd.f32 %v699, %v700
    %v702 = vrot.slane %v701, 2
    %v703 = vadd.f32 %v701, %v702
    %v704 = vrot.slane %v703, 1
    %v705 = vadd.f32 %v703, %v704
    %v706 = vadd.f32 %v684, %v705
    %707 = vst [vmem:[#allocation4] sm:$0x1] %v706
    // Predicated region
    $region26: #{tpu_custom_call.1} parent=1 // pred_check
      %p708 = pneg %p32
    $region27: #{tpu_custom_call.1} parent=1 // pred_check_branch
      %710 = sbr.rel (%p708) target = $region29
    $region28: #{tpu_custom_call.1} parent=1 // pred_region
      %v711 = vld [vmem:[#allocation2] sm:$0x1]
      %v712 = vld [vmem:[#allocation3] sm:$0x1]
      %v713 = vld [vmem:[#allocation4] sm:$0x1]
      %v714 = vadd.f32 %v711, 1e-08
      %v715 = vlog2.pop %v714
      %v716 = vmul.f32 %v715, 0.6931472
      %v717 = vmul.f32 %v716, %v713
      %v718 = vsub.f32 %v712, %v717
      %v719 = vadd.f32 %v713, 1e-08
      %v720 = vrcp.pop %v719
      %v721 = vmul.f32 %v718, %v720
      %722 = vst [vmem:[#allocation8] sm:$0x1] %v721
    $region29: #{tpu_custom_call.1} parent=1 // pred_fallthru
      _
    // Predicated region
    $region30: #{tpu_custom_call.1} parent=1 // pred_check
      _
    $region31: #{tpu_custom_call.1} parent=1 // pred_check_branch
      %724 = sbr.rel (0) target = $region33
    $region32: #{tpu_custom_call.1} parent=1 // pred_region
      %s726 = ssub.s32 16, 16
      %727 = vsyncadd [#allocation7], %s726
      %s729 = sshll.u32 [#allocation8], 4
      %s730 = int_to_ptr.vmem [resolvable:$true] %s729
      %732 = dma.vmem_to_hbm [thread:$0]  %s730, 16, %s4, [#allocation7]
    $region33: #{tpu_custom_call.1} parent=1 // pred_fallthru
      _
    // Predicated region
    $region34: #{tpu_custom_call.1} parent=1 // pred_check
      _
    $region35: #{tpu_custom_call.1} parent=1 // pred_check_branch
      %734 = sbr.rel (0) target = $region37
    $region36: #{tpu_custom_call.1} parent=1 // pred_region
      %735 = dma.done [#allocation7], 16
    $region37: #{tpu_custom_call.1} parent=1 // pred_fallthru
      _
    %736 = vsyncpa [#allocation6], 1
    %737 = vsyncpa [#allocation7], 1

</llo_original>
